<compile_context>
chip_gen: v5e
topology: v5e:2x2
jax: 0.10.0
libtpu: 0.0.40
codegen_flags: <defaults>
</compile_context>

<pallas_src>
import jax
import jax.numpy as jnp
from jax.experimental import pallas as pl
from jax.experimental.pallas import tpu as pltpu

_LANE = 128
_SUBLANE = 8


def _round_up(x, m):
    return (x + m - 1) // m * m


def _actor_kernel(x_ref, w1_ref, b1_ref, w2_ref, b2_ref, wo_ref, bo_ref, out_ref):
    # Cast activations to the weight dtype so the MXU runs its native
    # (bf16 x bf16 -> f32) path; accumulation stays f32 throughout.
    x = x_ref[...].astype(w1_ref.dtype)

    # linear1 + relu
    h1 = jnp.dot(x, w1_ref[...], preferred_element_type=jnp.float32) + b1_ref[...]
    h1 = jnp.maximum(h1, 0.0)

    # linear2 (no activation, matching the PyTorch forward)
    h2 = jnp.dot(h1.astype(w2_ref.dtype), w2_ref[...],
                 preferred_element_type=jnp.float32) + b2_ref[...]

    # fused output heads: one (TILE_B, hidden2) x (hidden2, 128) MXU matmul on
    # the zero-padded weight; only the real lanes are stored.
    out = jnp.dot(h2.astype(wo_ref.dtype), wo_ref[...],
                  preferred_element_type=jnp.float32) + bo_ref[...]

    n_real = out_ref.shape[-1]
    out_ref[...] = out[:, :n_real].astype(out_ref.dtype)


def prepare_actor_params(params, compute_dtype=jnp.bfloat16):
    """ONE-TIME layout conversion (do NOT call per forward).

    Input `params` follows the PyTorch convention: weight (out, in), bias (out,).
    Returns (kernel_params, (out_dim1, out_dim2)) where kernel_params holds:
      * w1, w2: (in, out) weights in `compute_dtype`
      * b1, b2: (1, out) f32 biases
      * wo, bo: the two output heads fused along the lane axis and zero-padded
                to a multiple of 128 lanes (pad lanes are sliced off in the
                wrapper; only d1+d2 lanes are ever stored to HBM).
    """
    d1 = params["wo1"].shape[0]
    d2 = params["wo2"].shape[0]
    out_pad = _round_up(d1 + d2, _LANE)

    wo = jnp.concatenate([params["wo1"].T, params["wo2"].T], axis=1)
    wo = jnp.pad(wo, ((0, 0), (0, out_pad - (d1 + d2))))
    bo = jnp.concatenate([params["bo1"], params["bo2"]])
    bo = jnp.pad(bo, (0, out_pad - (d1 + d2)))

    kparams = dict(
        w1=params["w1"].T.astype(compute_dtype),
        b1=params["b1"][None, :].astype(jnp.float32),
        w2=params["w2"].T.astype(compute_dtype),
        b2=params["b2"][None, :].astype(jnp.float32),
        wo=wo.astype(compute_dtype),
        bo=bo[None, :].astype(jnp.float32),
    )
    return kparams, (d1, d2)


def _estimate_vmem_bytes(tb, in_dim, h1, h2, out_pad, out_true, kparams):
    """Rough upper bound on per-step VMEM use (f32 intermediates, dbl-buffered IO)."""
    per_row = 4 * (2 * in_dim        # x tile, double-buffered (f32 input)
                   + h1 + h2         # live f32 intermediates
                   + out_pad         # padded dot result before slice
                   + 2 * out_true)   # output tile, double-buffered
    w_bytes = sum(int(v.size) * v.dtype.itemsize for v in kparams.values())
    return tb * per_row + w_bytes


def actor_forward(x, kparams, out_dims, *, tile_b=4096):
    """Run the Actor forward pass as a single Pallas TPU kernel.

    x:        (B, input_dim) float32
    kparams:  output of prepare_actor_params (kernel-layout weights)
    out_dims: (out_dim1, out_dim2) static head widths
    """
    d1, d2 = out_dims
    out_true = d1 + d2
    B, in_dim = x.shape
    out_pad = kparams["wo"].shape[1]
    h1 = kparams["w1"].shape[1]
    h2 = kparams["w2"].shape[1]

    # Batch tiling: sublane-aligned tile; clamp so the grid has >= 2 steps when
    # the batch allows it (v7x has 2 TensorCores sharing "parallel" grid axes).
    tb = _round_up(min(tile_b, B), _SUBLANE)
    if B > _SUBLANE:
        tb = min(tb, _round_up(pl.cdiv(B, 2), _SUBLANE))
    padded_b = _round_up(B, tb)
    if padded_b != B:
        x = jnp.pad(x, ((0, padded_b - B), (0, 0)))

    grid = (padded_b // tb,)

    x_map = lambda i: (i, 0)        # activations tiled over batch
    const_map = lambda i: (0, 0)    # weights/biases resident across grid steps

    w1, b1, w2, b2, wo, bo = (kparams[k] for k in ("w1", "b1", "w2", "b2", "wo", "bo"))

    # Explicit scoped-VMEM budget: large tiles overflow v5e's 16 MiB default;
    # keep the request modest so it also fits v7x's 64 MiB physical VMEM.
    vmem_est = _estimate_vmem_bytes(tb, in_dim, h1, h2, out_pad, out_true, kparams)
    vmem_limit = int(min(96 << 20, max(32 << 20, vmem_est * 3 // 2)))

    out = pl.pallas_call(
        _actor_kernel,
        out_shape=jax.ShapeDtypeStruct((padded_b, out_true), jnp.float32),
        grid=grid,
        in_specs=[
            pl.BlockSpec((tb, in_dim), x_map),
            pl.BlockSpec(w1.shape, const_map),
            pl.BlockSpec(b1.shape, const_map),
            pl.BlockSpec(w2.shape, const_map),
            pl.BlockSpec(b2.shape, const_map),
            pl.BlockSpec(wo.shape, const_map),
            pl.BlockSpec(bo.shape, const_map),
        ],
        out_specs=pl.BlockSpec((tb, out_true), x_map),
        compiler_params=pltpu.CompilerParams(
            dimension_semantics=("parallel",),
            vmem_limit_bytes=vmem_limit,
        ),
    )(x, w1, b1, w2, b2, wo, bo)

    out = out[:B]
    return out[:, :d1], out[:, d1:d1 + d2]


def init_actor_params(key, input_dim, out_dim, hidden_dim=(256, 128)):
    """Deterministic init mirroring nn.Linear default (uniform(-1/sqrt(in), 1/sqrt(in)))."""
    def linear_init(k, fan_in, fan_out):
        kw, kb = jax.random.split(k)
        bound = 1.0 / jnp.sqrt(fan_in)
        w = jax.random.uniform(kw, (fan_out, fan_in), jnp.float32, -bound, bound)
        b = jax.random.uniform(kb, (fan_out,), jnp.float32, -bound, bound)
        return w, b

    k1, k2, k3, k4 = jax.random.split(key, 4)
    w1, b1 = linear_init(k1, input_dim, hidden_dim[0])
    w2, b2 = linear_init(k2, hidden_dim[0], hidden_dim[1])
    wo1, bo1 = linear_init(k3, hidden_dim[1], out_dim[0])
    wo2, bo2 = linear_init(k4, hidden_dim[1], out_dim[1])
    return dict(w1=w1, b1=b1, w2=w2, b2=b2, wo1=wo1, bo1=bo1, wo2=wo2, bo2=bo2)


def actor_forward_ref(x, params):
    """Pure-JAX reference (mirrors the PyTorch forward)."""
    x1 = jnp.maximum(x @ params["w1"].T + params["b1"], 0.0)
    x2 = x1 @ params["w2"].T + params["b2"]
    out1 = x2 @ params["wo1"].T + params["bo1"]
    out2 = x2 @ params["wo2"].T + params["bo2"]
    return out1, out2


if __name__ == "__main__":
    key = jax.random.PRNGKey(0)
    k_param, k_x = jax.random.split(key)

    # Small shapes consistent with the module.
    batch = 4
    input_dim = 16
    out_dim = (3, 5)
    hidden_dim = (256, 128)

    params = init_actor_params(k_param, input_dim, out_dim, hidden_dim)
    x = jax.random.normal(k_x, (batch, input_dim), jnp.float32)

    ref1, ref2 = actor_forward_ref(x, params)

    # f32 path: bit-tight check against the reference.
    kparams_f32, out_dims = prepare_actor_params(params, compute_dtype=jnp.float32)
    o1_f32, o2_f32 = actor_forward(x, kparams_f32, out_dims)
    jax.block_until_ready((o1_f32, o2_f32))
    assert o1_f32.shape == (batch, out_dim[0]) and o2_f32.shape == (batch, out_dim[1])
    assert jnp.allclose(o1_f32, ref1, atol=1e-5, rtol=1e-5)
    assert jnp.allclose(o2_f32, ref2, atol=1e-5, rtol=1e-5)

    # Default bf16 path: relaxed tolerance (operand rounding only; f32 accum).
    kparams_bf16, _ = prepare_actor_params(params)  # compute_dtype=bf16
    o1_bf, o2_bf = actor_forward(x, kparams_bf16, out_dims)
    jax.block_until_ready((o1_bf, o2_bf))
    assert o1_bf.shape == (batch, out_dim[0]) and o2_bf.shape == (batch, out_dim[1])
    assert jnp.allclose(o1_bf, ref1, atol=5e-2, rtol=5e-2)
    assert jnp.allclose(o2_bf, ref2, atol=5e-2, rtol=5e-2)

    print("KERNEL_OK")
</pallas_src>

<mosaic_0001>
module attributes {stable_mosaic.version = 11 : i64} {
  func.func @_actor_kernel(%arg0: i32, %arg1: memref<8x16xf32, #tpu.memory_space<vmem>>, %arg2: memref<16x256xf32, #tpu.memory_space<vmem>>, %arg3: memref<1x256xf32, #tpu.memory_space<vmem>>, %arg4: memref<256x128xf32, #tpu.memory_space<vmem>>, %arg5: memref<1x128xf32, #tpu.memory_space<vmem>>, %arg6: memref<128x128xf32, #tpu.memory_space<vmem>>, %arg7: memref<1x128xf32, #tpu.memory_space<vmem>>, %arg8: memref<8x8xf32, #tpu.memory_space<vmem>>) attributes {dimension_semantics = [#tpu.dimension_semantics<parallel>], iteration_bounds = array<i64: 1>, scalar_prefetch = 0 : i64, scratch_operands = 0 : i64, tpu.core_type = #tpu.core_type<tc>, window_params = [{transform_indices = @transform_0, window_bounds = array<i64: 8, 16>}, {pipeline_mode = #tpu.pipeline_mode<synchronous>, transform_indices = @transform_1, window_bounds = array<i64: 16, 256>}, {pipeline_mode = #tpu.pipeline_mode<synchronous>, transform_indices = @transform_2, window_bounds = array<i64: 1, 256>}, {pipeline_mode = #tpu.pipeline_mode<synchronous>, transform_indices = @transform_3, window_bounds = array<i64: 256, 128>}, {pipeline_mode = #tpu.pipeline_mode<synchronous>, transform_indices = @transform_4, window_bounds = array<i64: 1, 128>}, {pipeline_mode = #tpu.pipeline_mode<synchronous>, transform_indices = @transform_5, window_bounds = array<i64: 128, 128>}, {pipeline_mode = #tpu.pipeline_mode<synchronous>, transform_indices = @transform_6, window_bounds = array<i64: 1, 128>}, {transform_indices = @transform_7, window_bounds = array<i64: 8, 8>}]} {
    %c0 = arith.constant 0 : index
    %c0_0 = arith.constant 0 : index
    %0 = vector.load %arg1[%c0, %c0_0] : memref<8x16xf32, #tpu.memory_space<vmem>>, vector<8x16xf32>
    %c0_1 = arith.constant 0 : index
    %c0_2 = arith.constant 0 : index
    %1 = vector.load %arg2[%c0_1, %c0_2] : memref<16x256xf32, #tpu.memory_space<vmem>>, vector<16x256xf32>
    %cst = arith.constant dense<0.000000e+00> : vector<8x256xf32>
    %2 = tpu.matmul %0, %1, %cst {dimension_numbers = #tpu.dot_dimension_numbers<[1], [0], [0], [1], [0, 0, 1, 1], [], []>} : vector<8x16xf32>, vector<16x256xf32>, vector<8x256xf32> -> vector<8x256xf32>
    %c0_3 = arith.constant 0 : index
    %c0_4 = arith.constant 0 : index
    %3 = vector.load %arg3[%c0_3, %c0_4] : memref<1x256xf32, #tpu.memory_space<vmem>>, vector<1x256xf32>
    %4 = vector.broadcast %3 : vector<1x256xf32> to vector<8x256xf32>
    %5 = arith.addf %2, %4 : vector<8x256xf32>
    %cst_5 = arith.constant 0.000000e+00 : f32
    %6 = vector.broadcast %cst_5 : f32 to vector<8x256xf32>
    %7 = arith.maximumf %5, %6 : vector<8x256xf32>
    %c0_6 = arith.constant 0 : index
    %c0_7 = arith.constant 0 : index
    %8 = vector.load %arg4[%c0_6, %c0_7] : memref<256x128xf32, #tpu.memory_space<vmem>>, vector<256x128xf32>
    %cst_8 = arith.constant dense<0.000000e+00> : vector<8x128xf32>
    %9 = tpu.matmul %7, %8, %cst_8 {dimension_numbers = #tpu.dot_dimension_numbers<[1], [0], [0], [1], [0, 0, 1, 1], [], []>} : vector<8x256xf32>, vector<256x128xf32>, vector<8x128xf32> -> vector<8x128xf32>
    %c0_9 = arith.constant 0 : index
    %c0_10 = arith.constant 0 : index
    %10 = vector.load %arg5[%c0_9, %c0_10] : memref<1x128xf32, #tpu.memory_space<vmem>>, vector<1x128xf32>
    %11 = vector.broadcast %10 : vector<1x128xf32> to vector<8x128xf32>
    %12 = arith.addf %9, %11 : vector<8x128xf32>
    %c0_11 = arith.constant 0 : index
    %c0_12 = arith.constant 0 : index
    %13 = vector.load %arg6[%c0_11, %c0_12] : memref<128x128xf32, #tpu.memory_space<vmem>>, vector<128x128xf32>
    %cst_13 = arith.constant dense<0.000000e+00> : vector<8x128xf32>
    %14 = tpu.matmul %12, %13, %cst_13 {dimension_numbers = #tpu.dot_dimension_numbers<[1], [0], [0], [1], [0, 0, 1, 1], [], []>} : vector<8x128xf32>, vector<128x128xf32>, vector<8x128xf32> -> vector<8x128xf32>
    %c0_14 = arith.constant 0 : index
    %c0_15 = arith.constant 0 : index
    %15 = vector.load %arg7[%c0_14, %c0_15] : memref<1x128xf32, #tpu.memory_space<vmem>>, vector<1x128xf32>
    %16 = vector.broadcast %15 : vector<1x128xf32> to vector<8x128xf32>
    %17 = arith.addf %14, %16 : vector<8x128xf32>
    %18 = vector.extract_strided_slice %17 {offsets = [0, 0], sizes = [8, 8], strides = [1, 1]} : vector<8x128xf32> to vector<8x8xf32>
    %c0_16 = arith.constant 0 : index
    %c0_17 = arith.constant 0 : index
    %19 = vector.load %arg8[%c0_16, %c0_17] : memref<8x8xf32, #tpu.memory_space<vmem>>, vector<8x8xf32>
    tpu.vector_store %arg8[%c0_16, %c0_17], %18 {strides = array<i32>} : memref<8x8xf32, #tpu.memory_space<vmem>>, vector<8x8xf32>,
    return
  }
  func.func @transform_0(%arg0: i32) -> (i32, i32) {
    %c0_i32 = arith.constant 0 : i32
    %c0_i32_0 = arith.constant 0 : i32
    return %arg0, %c0_i32 : i32, i32
  }
  func.func @transform_1(%arg0: i32) -> (i32, i32) {
    %c0_i32 = arith.constant 0 : i32
    %c0_i32_0 = arith.constant 0 : i32
    %c0_i32_1 = arith.constant 0 : i32
    return %c0_i32, %c0_i32_0 : i32, i32
  }
  func.func @transform_2(%arg0: i32) -> (i32, i32) {
    %c0_i32 = arith.constant 0 : i32
    %c0_i32_0 = arith.constant 0 : i32
    %c0_i32_1 = arith.constant 0 : i32
    return %c0_i32, %c0_i32_0 : i32, i32
  }
  func.func @transform_3(%arg0: i32) -> (i32, i32) {
    %c0_i32 = arith.constant 0 : i32
    %c0_i32_0 = arith.constant 0 : i32
    %c0_i32_1 = arith.constant 0 : i32
    return %c0_i32, %c0_i32_0 : i32, i32
  }
  func.func @transform_4(%arg0: i32) -> (i32, i32) {
    %c0_i32 = arith.constant 0 : i32
    %c0_i32_0 = arith.constant 0 : i32
    %c0_i32_1 = arith.constant 0 : i32
    return %c0_i32, %c0_i32_0 : i32, i32
  }
  func.func @transform_5(%arg0: i32) -> (i32, i32) {
    %c0_i32 = arith.constant 0 : i32
    %c0_i32_0 = arith.constant 0 : i32
    %c0_i32_1 = arith.constant 0 : i32
    return %c0_i32, %c0_i32_0 : i32, i32
  }
  func.func @transform_6(%arg0: i32) -> (i32, i32) {
    %c0_i32 = arith.constant 0 : i32
    %c0_i32_0 = arith.constant 0 : i32
    %c0_i32_1 = arith.constant 0 : i32
    return %c0_i32, %c0_i32_0 : i32, i32
  }
  func.func @transform_7(%arg0: i32) -> (i32, i32) {
    %c0_i32 = arith.constant 0 : i32
    %c0_i32_0 = arith.constant 0 : i32
    return %arg0, %c0_i32 : i32, i32
  }
}

</mosaic_0001>

<llo_original>
// kernel: tpu_custom_call.1
$region0: #{tpu_custom_call.1}
  #allocation0 [shape = 'u32[]', space=smem, size = 0x4, offset = 0x4, fixed_abs, tag = 'smem constant byte address 0x4 - core index']
  #allocation1 [shape = 'u32[72,128]{1,0:T(1,128)}', space=vmem, size = 0x9000, scoped, tag = 'internal scratch']
  %s0 = inlined_call_operand.hbm [shape: f32[8,16], index: 0, kind: input, shape index: {}]
  %s1 = inlined_call_operand.hbm [shape: f32[16,256], index: 1, kind: input, shape index: {}]
  %s2 = inlined_call_operand.hbm [shape: f32[1,256], index: 2, kind: input, shape index: {}]
  %s3 = inlined_call_operand.hbm [shape: f32[256,128], index: 3, kind: input, shape index: {}]
  %s4 = inlined_call_operand.vmem [shape: f32[1,128], index: 4, kind: input, shape index: {}]
  %s5 = inlined_call_operand.hbm [shape: f32[128,128], index: 5, kind: input, shape index: {}]
  %s6 = inlined_call_operand.vmem [shape: f32[1,128], index: 6, kind: input, shape index: {}]
  %s7 = inlined_call_operand.hbm [shape: f32[8,8], index: 7, kind: output, shape index: {}]
  %s8 = sld [smem:[#allocation0]]
  $region58: #{tpu_custom_call.1} parent=0
    _
  %s10 = ssub.s32 1, %s8
  %s11 = scalar_select 0, %s10, %s8
  $region1: #{tpu_custom_call.1} parent=0
    #allocation2 [shape = 'u8[4096]{0}', space=vmem, size = 0x1000, scoped, tag = 'input window, operand 0, single buffered']
    #allocation3 [shape = 's32[1]{0}', space=sflag, size = 0x4, scoped, tag = 'scoped memory for tpu_custom_call.1']
    #allocation4 [shape = 's32[1]{0}', space=sflag, size = 0x4, scoped, tag = 'scoped memory for tpu_custom_call.1']
    #allocation5 [shape = 'u8[16384]{0}', space=vmem, size = 0x4000, scoped, tag = 'input window, operand 1, single buffered']
    #allocation6 [shape = 's32[1]{0}', space=sflag, size = 0x4, scoped, tag = 'scoped memory for tpu_custom_call.1']
    #allocation7 [shape = 'u8[1024]{0}', space=vmem, size = 0x400, scoped, tag = 'input window, operand 2, single buffered']
    #allocation8 [shape = 'u8[131072]{0}', space=vmem, size = 0x20000, scoped, tag = 'input window, operand 3, single buffered']
    #allocation9 [shape = 's32[1]{0}', space=sflag, size = 0x4, scoped, tag = 'scoped memory for tpu_custom_call.1']
    #allocation10 [shape = 'u8[65536]{0}', space=vmem, size = 0x10000, scoped, tag = 'input window, operand 5, single buffered']
    #allocation11 [shape = 'u8[4096]{0}', space=vmem, size = 0x1000, scoped, tag = 'output window, operand 0, single buffered']
    %12 = vsyncpa [#allocation3], 0
    %13 = vsyncpa [#allocation6], 0
    %14 = vsyncpa [#allocation9], 0
    %15 = vsyncpa [#allocation4], 0
    // Predicated region
    $region2: #{tpu_custom_call.1} parent=1 // pred_check
      _
    $region3: #{tpu_custom_call.1} parent=1 // pred_check_branch
      %17 = sbr.rel (0) target = $region5
    $region4: #{tpu_custom_call.1} parent=1 // pred_region
      %19 = vsyncadd [#allocation3], 0
      %s21 = sshll.u32 %s0, 4
      %s22 = int_to_ptr.hbm [resolvable:$true] %s21
      %s23 = sshll.u32 [#allocation2], 4
      %s24 = int_to_ptr.vmem [resolvable:$true] %s23
      %26 = dma.hbm_to_vmem [thread:$0]  %s22, 128, %s24, [#allocation3]
    $region5: #{tpu_custom_call.1} parent=1 // pred_fallthru
      _
    // Predicated region
    $region6: #{tpu_custom_call.1} parent=1 // pred_check
      _
    $region7: #{tpu_custom_call.1} parent=1 // pred_check_branch
      %28 = sbr.rel (0) target = $region9
    $region8: #{tpu_custom_call.1} parent=1 // pred_region
      %30 = vsyncadd [#allocation6], 0
      %s31 = sshll.u32 %s1, 4
      %s32 = int_to_ptr.hbm [resolvable:$true] %s31
      %s33 = sshll.u32 [#allocation5], 4
      %s34 = int_to_ptr.vmem [resolvable:$true] %s33
      %39 = dma.hbm_to_vmem [thread:$0]  %s32, 512, %s34, [#allocation6], 256, 256, 16
    $region9: #{tpu_custom_call.1} parent=1 // pred_fallthru
      _
    // Predicated region
    $region10: #{tpu_custom_call.1} parent=1 // pred_check
      _
    $region11: #{tpu_custom_call.1} parent=1 // pred_check_branch
      %41 = sbr.rel (0) target = $region13
    $region12: #{tpu_custom_call.1} parent=1 // pred_region
      %43 = vsyncadd [#allocation6], 0
      %s45 = sshll.u32 %s2, 4
      %s46 = int_to_ptr.hbm [resolvable:$true] %s45
      %s47 = sshll.u32 [#allocation7], 4
      %s48 = int_to_ptr.vmem [resolvable:$true] %s47
      %50 = dma.hbm_to_vmem [thread:$0]  %s46, 32, %s48, [#allocation6]
    $region13: #{tpu_custom_call.1} parent=1 // pred_fallthru
      _
    // Predicated region
    $region14: #{tpu_custom_call.1} parent=1 // pred_check
      _
    $region15: #{tpu_custom_call.1} parent=1 // pred_check_branch
      %52 = sbr.rel (0) target = $region17
    $region16: #{tpu_custom_call.1} parent=1 // pred_region
      %54 = vsyncadd [#allocation9], 0
      %s55 = sshll.u32 %s3, 4
      %s56 = int_to_ptr.hbm [resolvable:$true] %s55
      %s57 = sshll.u32 [#allocation8], 4
      %s58 = int_to_ptr.vmem [resolvable:$true] %s57
      %63 = dma.hbm_to_vmem [thread:$0]  %s56, 4096, %s58, [#allocation9], 128, 128, 8
    $region17: #{tpu_custom_call.1} parent=1 // pred_fallthru
      _
    // Predicated region
    $region18: #{tpu_custom_call.1} parent=1 // pred_check
      _
    $region19: #{tpu_custom_call.1} parent=1 // pred_check_branch
      %65 = sbr.rel (0) target = $region21
    $region20: #{tpu_custom_call.1} parent=1 // pred_region
      _
    $region21: #{tpu_custom_call.1} parent=1 // pred_fallthru
      _
    // Predicated region
    $region22: #{tpu_custom_call.1} parent=1 // pred_check
      _
    $region23: #{tpu_custom_call.1} parent=1 // pred_check_branch
      %67 = sbr.rel (0) target = $region25
    $region24: #{tpu_custom_call.1} parent=1 // pred_region
      %69 = vsyncadd [#allocation9], 0
      %s70 = sshll.u32 %s5, 4
      %s71 = int_to_ptr.hbm [resolvable:$true] %s70
      %s72 = sshll.u32 [#allocation10], 4
      %s73 = int_to_ptr.vmem [resolvable:$true] %s72
      %78 = dma.hbm_to_vmem [thread:$0]  %s71, 2048, %s73, [#allocation9], 128, 128, 8
    $region25: #{tpu_custom_call.1} parent=1 // pred_fallthru
      _
    // Predicated region
    $region26: #{tpu_custom_call.1} parent=1 // pred_check
      _
    $region27: #{tpu_custom_call.1} parent=1 // pred_check_branch
      %80 = sbr.rel (0) target = $region29
    $region28: #{tpu_custom_call.1} parent=1 // pred_region
      _
    $region29: #{tpu_custom_call.1} parent=1 // pred_fallthru
      _
    // Predicated region
    $region30: #{tpu_custom_call.1} parent=1 // pred_check
      _
    $region31: #{tpu_custom_call.1} parent=1 // pred_check_branch
      %82 = sbr.rel (0) target = $region33
    $region32: #{tpu_custom_call.1} parent=1 // pred_region
      %84 = dma.done [#allocation3], 128
    $region33: #{tpu_custom_call.1} parent=1 // pred_fallthru
      _
    // Predicated region
    $region34: #{tpu_custom_call.1} parent=1 // pred_check
      _
    $region35: #{tpu_custom_call.1} parent=1 // pred_check_branch
      %86 = sbr.rel (0) target = $region37
    $region36: #{tpu_custom_call.1} parent=1 // pred_region
      %88 = dma.done [#allocation6], 512
    $region37: #{tpu_custom_call.1} parent=1 // pred_fallthru
      _
    // Predicated region
    $region38: #{tpu_custom_call.1} parent=1 // pred_check
      _
    $region39: #{tpu_custom_call.1} parent=1 // pred_check_branch
      %90 = sbr.rel (0) target = $region41
    $region40: #{tpu_custom_call.1} parent=1 // pred_region
      %92 = dma.done [#allocation6], 32
    $region41: #{tpu_custom_call.1} parent=1 // pred_fallthru
      _
    // Predicated region
    $region42: #{tpu_custom_call.1} parent=1 // pred_check
      _
    $region43: #{tpu_custom_call.1} parent=1 // pred_check_branch
      %94 = sbr.rel (0) target = $region45
    $region44: #{tpu_custom_call.1} parent=1 // pred_region
      %96 = dma.done [#allocation9], 4096
    $region45: #{tpu_custom_call.1} parent=1 // pred_fallthru
      _
    // Predicated region
    $region46: #{tpu_custom_call.1} parent=1 // pred_check
      _
    $region47: #{tpu_custom_call.1} parent=1 // pred_check_branch
      %98 = sbr.rel (0) target = $region49
    $region48: #{tpu_custom_call.1} parent=1 // pred_region
      %100 = dma.done [#allocation9], 2048
    $region49: #{tpu_custom_call.1} parent=1 // pred_fallthru
      _
    %v101 = vld [vmem:[#allocation2] sm:$0xff]
    %v102 = vld [vmem:[#allocation5] sm:$0xff]
    %v103 = vld [vmem:[#allocation5 + $0x8] sm:$0xff]
    %v104 = vld [vmem:[#allocation5 + $0x10] sm:$0xff]
    %v105 = vld [vmem:[#allocation5 + $0x18] sm:$0xff]
    %v106 = vld [vmem:[#allocation7] sm:$0x3]
    %v108 = vperm.slane %v106, 0
    %v109 = vperm.slane %v106, 1
    %vm112 = vcmask 130048
    %v114 = vsel %vm112, %v101, 0
    %116 = vmatpush.msra.mxu0 0.0
    %117 = vmatpush.msra.mxu0 0.0
    %118 = vmatpush.msra.mxu0 0.0
    %119 = vmatpush.msra.mxu0 0.0
    %120 = vmatpush.msra.mxu0 0.0
    %121 = vmatpush.msra.mxu0 0.0
    %122 = vmatpush.msra.mxu0 0.0
    %123 = vmatpush.msra.mxu0 0.0
    %124 = vmatpush.msra.mxu0 0.0
    %125 = vmatpush.msra.mxu0 0.0
    %126 = vmatpush.msra.mxu0 0.0
    %127 = vmatpush.msra.mxu0 0.0
    %128 = vmatpush.msra.mxu0 0.0
    %129 = vmatpush.msra.mxu0 0.0
    %130 = vmatpush.msra.mxu0 %v104
    %131 = vmatpush.msra.mxu0 %v102
    %132 = vmatmul.f32.gmra.mxu0 %v114
    %v133 = vpop.f32.mrf.mxu0
    %v134 = vadd.f32 %v108, %v133
    %135 = vdwg.mxu0
    %136 = vmatpush.msra.mxu0 0.0
    %137 = vmatpush.msra.mxu0 0.0
    %138 = vmatpush.msra.mxu0 0.0
    %139 = vmatpush.msra.mxu0 0.0
    %140 = vmatpush.msra.mxu0 0.0
    %141 = vmatpush.msra.mxu0 0.0
    %142 = vmatpush.msra.mxu0 0.0
    %143 = vmatpush.msra.mxu0 0.0
    %144 = vmatpush.msra.mxu0 0.0
    %145 = vmatpush.msra.mxu0 0.0
    %146 = vmatpush.msra.mxu0 0.0
    %147 = vmatpush.msra.mxu0 0.0
    %148 = vmatpush.msra.mxu0 0.0
    %149 = vmatpush.msra.mxu0 0.0
    %150 = vmatpush.msra.mxu0 %v105
    %151 = vmatpush.msra.mxu0 %v103
    %152 = vmatmul.f32.gmra.mxu0 %v114
    %v153 = vpop.f32.mrf.mxu0
    %v154 = vadd.f32 %v109, %v153
    %155 = vdwg.mxu0
    %v156 = vmax.f32 %v134, 0.0
    %v157 = vmax.f32 %v154, 0.0
    %v158 = vld [vmem:[#allocation8] sm:$0xff]
    %v159 = vld [vmem:[#allocation8 + $0x8] sm:$0xff]
    %v160 = vld [vmem:[#allocation8 + $0x10] sm:$0xff]
    %v161 = vld [vmem:[#allocation8 + $0x18] sm:$0xff]
    %v162 = vld [vmem:[#allocation8 + $0x20] sm:$0xff]
    %v163 = vld [vmem:[#allocation8 + $0x28] sm:$0xff]
    %v164 = vld [vmem:[#allocation8 + $0x30] sm:$0xff]
    %v165 = vld [vmem:[#allocation8 + $0x38] sm:$0xff]
    %v166 = vld [vmem:[#allocation8 + $0x40] sm:$0xff]
    %v167 = vld [vmem:[#allocation8 + $0x48] sm:$0xff]
    %v168 = vld [vmem:[#allocation8 + $0x50] sm:$0xff]
    %v169 = vld [vmem:[#allocation8 + $0x58] sm:$0xff]
    %v170 = vld [vmem:[#allocation8 + $0x60] sm:$0xff]
    %v171 = vld [vmem:[#allocation8 + $0x68] sm:$0xff]
    %v172 = vld [vmem:[#allocation8 + $0x70] sm:$0xff]
    %v173 = vld [vmem:[#allocation8 + $0x78] sm:$0xff]
    %v174 = vld [vmem:[#allocation8 + $0x80] sm:$0xff]
    %v175 = vld [vmem:[#allocation8 + $0x88] sm:$0xff]
    %v176 = vld [vmem:[#allocation8 + $0x90] sm:$0xff]
    %v177 = vld [vmem:[#allocation8 + $0x98] sm:$0xff]
    %v178 = vld [vmem:[#allocation8 + $0xa0] sm:$0xff]
    %v179 = vld [vmem:[#allocation8 + $0xa8] sm:$0xff]
    %v180 = vld [vmem:[#allocation8 + $0xb0] sm:$0xff]
    %v181 = vld [vmem:[#allocation8 + $0xb8] sm:$0xff]
    %v182 = vld [vmem:[#allocation8 + $0xc0] sm:$0xff]
    %v183 = vld [vmem:[#allocation8 + $0xc8] sm:$0xff]
    %v184 = vld [vmem:[#allocation8 + $0xd0] sm:$0xff]
    %v185 = vld [vmem:[#allocation8 + $0xd8] sm:$0xff]
    %v186 = vld [vmem:[#allocation8 + $0xe0] sm:$0xff]
    %v187 = vld [vmem:[#allocation8 + $0xe8] sm:$0xff]
    %v188 = vld [vmem:[#allocation8 + $0xf0] sm:$0xff]
    %v189 = vld [vmem:[#allocation8 + $0xf8] sm:$0xff]
    %v190 = vld [vmem:[%s4] sm:$0x1]
    %v192 = vperm.slane %v190, 0
    %194 = vmatpush.msra.mxu0 %v173
    %195 = vmatpush.msra.mxu0 %v172
    %196 = vmatpush.msra.mxu0 %v171
    %197 = vmatpush.msra.mxu0 %v170
    %198 = vmatpush.msra.mxu0 %v169
    %199 = vmatpush.msra.mxu0 %v168
    %200 = vmatpush.msra.mxu0 %v167
    %201 = vmatpush.msra.mxu0 %v166
    %202 = vmatpush.msra.mxu0 %v165
    %203 = vmatpush.msra.mxu0 %v164
    %204 = vmatpush.msra.mxu0 %v163
    %205 = vmatpush.msra.mxu0 %v162
    %206 = vmatpush.msra.mxu0 %v161
    %207 = vmatpush.msra.mxu0 %v160
    %208 = vmatpush.msra.mxu0 %v159
    %209 = vmatpush.msra.mxu0 %v158
    %210 = vmatmul.f32.gmra.mxu0 %v156
    %v211 = vpop.f32.mrf.mxu0
    %v212 = vadd.f32 %v192, %v211
    %213 = vdwg.mxu0
    %214 = vmatpush.msra.mxu0 %v189
    %215 = vmatpush.msra.mxu0 %v188
    %216 = vmatpush.msra.mxu0 %v187
    %217 = vmatpush.msra.mxu0 %v186
    %218 = vmatpush.msra.mxu0 %v185
    %219 = vmatpush.msra.mxu0 %v184
    %220 = vmatpush.msra.mxu0 %v183
    %221 = vmatpush.msra.mxu0 %v182
    %222 = vmatpush.msra.mxu0 %v181
    %223 = vmatpush.msra.mxu0 %v180
    %224 = vmatpush.msra.mxu0 %v179
    %225 = vmatpush.msra.mxu0 %v178
    %226 = vmatpush.msra.mxu0 %v177
    %227 = vmatpush.msra.mxu0 %v176
    %228 = vmatpush.msra.mxu0 %v175
    %229 = vmatpush.msra.mxu0 %v174
    %230 = vmatmul.f32.gmra.mxu0 %v157
    %v231 = vpop.f32.mrf.mxu0
    %v232 = vadd.f32 %v212, %v231
    %233 = vdwg.mxu0
    %v234 = vld [vmem:[#allocation10] sm:$0xff]
    %v235 = vld [vmem:[#allocation10 + $0x8] sm:$0xff]
    %v236 = vld [vmem:[#allocation10 + $0x10] sm:$0xff]
    %v237 = vld [vmem:[#allocation10 + $0x18] sm:$0xff]
    %v238 = vld [vmem:[#allocation10 + $0x20] sm:$0xff]
    %v239 = vld [vmem:[#allocation10 + $0x28] sm:$0xff]
    %v240 = vld [vmem:[#allocation10 + $0x30] sm:$0xff]
    %v241 = vld [vmem:[#allocation10 + $0x38] sm:$0xff]
    %v242 = vld [vmem:[#allocation10 + $0x40] sm:$0xff]
    %v243 = vld [vmem:[#allocation10 + $0x48] sm:$0xff]
    %v244 = vld [vmem:[#allocation10 + $0x50] sm:$0xff]
    %v245 = vld [vmem:[#allocation10 + $0x58] sm:$0xff]
    %v246 = vld [vmem:[#allocation10 + $0x60] sm:$0xff]
    %v247 = vld [vmem:[#allocation10 + $0x68] sm:$0xff]
    %v248 = vld [vmem:[#allocation10 + $0x70] sm:$0xff]
    %v249 = vld [vmem:[#allocation10 + $0x78] sm:$0xff]
    %v250 = vld [vmem:[%s6] sm:$0x1]
    %v252 = vperm.slane %v250, 0
    %254 = vmatpush.msra.mxu0 %v249
    %255 = vmatpush.msra.mxu0 %v248
    %256 = vmatpush.msra.mxu0 %v247
    %257 = vmatpush.msra.mxu0 %v246
    %258 = vmatpush.msra.mxu0 %v245
    %259 = vmatpush.msra.mxu0 %v244
    %260 = vmatpush.msra.mxu0 %v243
    %261 = vmatpush.msra.mxu0 %v242
    %262 = vmatpush.msra.mxu0 %v241
    %263 = vmatpush.msra.mxu0 %v240
    %264 = vmatpush.msra.mxu0 %v239
    %265 = vmatpush.msra.mxu0 %v238
    %266 = vmatpush.msra.mxu0 %v237
    %267 = vmatpush.msra.mxu0 %v236
    %268 = vmatpush.msra.mxu0 %v235
    %269 = vmatpush.msra.mxu0 %v234
    %270 = vmatmul.f32.gmra.mxu0 %v232
    %v271 = vpop.f32.mrf.mxu0
    %v272 = vadd.f32 %v252, %v271
    %273 = vdwg.mxu0
    %vm274 = vcmask 64512
    %275 = vst.msk [vmem:[#allocation11] sm:$0xff] %vm274, %v272
    // Predicated region
    $region50: #{tpu_custom_call.1} parent=1 // pred_check
      _
    $region51: #{tpu_custom_call.1} parent=1 // pred_check_branch
      %277 = sbr.rel (0) target = $region53
    $region52: #{tpu_custom_call.1} parent=1 // pred_region
      %279 = vsyncadd [#allocation4], 0
      %s281 = sshll.u32 [#allocation11], 4
      %s282 = int_to_ptr.vmem [resolvable:$true] %s281
      %s283 = sshll.u32 %s7, 4
      %s284 = int_to_ptr.hbm [resolvable:$true] %s283
      %286 = dma.vmem_to_hbm [thread:$0]  %s282, 128, %s284, [#allocation4]
    $region53: #{tpu_custom_call.1} parent=1 // pred_fallthru
      _
    // Predicated region
    $region54: #{tpu_custom_call.1} parent=1 // pred_check
      _
    $region55: #{tpu_custom_call.1} parent=1 // pred_check_branch
      %288 = sbr.rel (0) target = $region57
    $region56: #{tpu_custom_call.1} parent=1 // pred_region
      %290 = dma.done [#allocation4], 128
    $region57: #{tpu_custom_call.1} parent=1 // pred_fallthru
      _
    %291 = vsyncpa [#allocation3], 1
    %292 = vsyncpa [#allocation6], 1
    %293 = vsyncpa [#allocation9], 1
    %294 = vsyncpa [#allocation4], 1

</llo_original>
